<compile_context>
chip_gen: v5e
topology: v5e:2x2
jax: 0.10.0
libtpu: 0.0.40
codegen_flags: <defaults>
</compile_context>

<pallas_src>
import jax
import jax.numpy as jnp
from jax.experimental import pallas as pl
from jax.experimental.pallas import tpu as pltpu

HIDDEN = 128  # hidden width of the MLP (fixed by the PyTorch module)


def _round_up(v, m):
    return ((v + m - 1) // m) * m


def play_network_kernel(x_ref, w1_ref, ws_ref, bs_ref, out_ref):
    """Fused 4-layer MLP for one (TM, K) batch tile.

    x_ref  : (TM, K) bf16       input tile (already in compute dtype)
    w1_ref : (K, 128) bf16      first-layer weight
    ws_ref : (3, 128, 128) bf16 stacked [w2, w3, w4_padded]
    bs_ref : (4, 128) f32       stacked [b1, b2, b3, b4_padded]
    out_ref: (TM, 128) f32      lane-dense output tile (cols >= n_actions are padding)
    """
    compute_dtype = w1_ref.dtype  # bf16

    # Layer 1: Linear(K, 128) + ReLU   (f32 accumulate, f32 epilogue)
    h = jnp.dot(x_ref[...], w1_ref[...], preferred_element_type=jnp.float32)
    h = jnp.maximum(h + bs_ref[0:1, :], 0.0).astype(compute_dtype)

    # Layers 2 and 3: Linear(128, 128) + ReLU
    for l in range(2):
        h = jnp.dot(h, ws_ref[l], preferred_element_type=jnp.float32)
        h = jnp.maximum(h + bs_ref[l + 1:l + 2, :], 0.0).astype(compute_dtype)

    # Layer 4: Linear(128, 128-padded n_actions), no activation.
    y = jnp.dot(h, ws_ref[2], preferred_element_type=jnp.float32) + bs_ref[3:4, :]

    out_ref[...] = y.astype(out_ref.dtype)


def pack_params(params, n_obs, k_eff, compute_dtype=jnp.bfloat16):
    """Pack the 8 Linear params into 3 DMA-friendly, lane-dense arrays."""
    H = HIDDEN
    n_actions = params["w4"].shape[1]
    assert n_actions <= H, "n_actions > 128 not supported"
    # TODO(synk): support n_actions > 128 by tiling the output lane dimension.

    if k_eff == n_obs:
        w1p = params["w1"].astype(compute_dtype)
    else:
        w1p = jnp.zeros((k_eff, H), jnp.float32).at[:n_obs].set(params["w1"])
        w1p = w1p.astype(compute_dtype)

    w4p = jnp.zeros((H, H), jnp.float32).at[:, :n_actions].set(params["w4"])
    ws = jnp.stack([params["w2"], params["w3"], w4p]).astype(compute_dtype)

    b4p = jnp.zeros((H,), jnp.float32).at[:n_actions].set(params["b4"][0])
    bs = jnp.stack(
        [params["b1"][0], params["b2"][0], params["b3"][0], b4p]
    ).astype(jnp.float32)

    return w1p, ws, bs


def play_network_forward(x, params, *, tm=None, compute_dtype=jnp.bfloat16):
    """x: (B, n_obs) float32.  params: dict with w1..w4 (in,out) and b1..b4 (1,out)."""
    B, n_obs = x.shape
    H = HIDDEN
    n_actions = params["w4"].shape[1]

    # Adaptive batch tile: tiny for small B (16 = bf16 sublane pack), up to 1024
    # for big batches (amortizes per-grid-step overhead; still ~0.5 MiB/tile of
    # streamed bf16 x + f32 out, far under scoped-VMEM limits).
    if tm is None:
        tm = min(1024, _round_up(max(B, 1), 16))

    # No K padding when n_obs <= 128: full-extent last-dim blocks are legal.
    k_eff = n_obs if n_obs <= 128 else _round_up(n_obs, 128)

    w1p, ws, bs = pack_params(params, n_obs, k_eff, compute_dtype)

    b_pad = _round_up(B, tm)

    # Single fused cast-to-bf16 (+ pad only if actually needed, on the half-size copy).
    x_c = x.astype(compute_dtype)
    if b_pad != B or k_eff != n_obs:
        x_c = jnp.pad(x_c, ((0, b_pad - B), (0, k_eff - n_obs)))

    out = pl.pallas_call(
        play_network_kernel,
        out_shape=jax.ShapeDtypeStruct((b_pad, H), jnp.float32),
        grid=(b_pad // tm,),
        in_specs=[
            # Streamed per batch tile (auto double-buffered), already bf16.
            pl.BlockSpec((tm, k_eff), lambda i: (i, 0)),
            # Parameters: constant index_map -> resident in VMEM across all tiles.
            pl.BlockSpec((k_eff, H), lambda i: (0, 0)),
            pl.BlockSpec((3, H, H), lambda i: (0, 0, 0)),
            pl.BlockSpec((4, H), lambda i: (0, 0)),
        ],
        out_specs=pl.BlockSpec((tm, H), lambda i: (i, 0)),
        compiler_params=pltpu.CompilerParams(
            dimension_semantics=("parallel",),  # shard batch tiles across TCs on v7x
        ),
    )(x_c, w1p, ws, bs)

    # Strip batch padding and the lane padding of the last layer.
    return out[:B, :n_actions]


def init_params(key, n_obs, n_actions, hidden=HIDDEN):
    """Deterministic init mirroring PyTorch nn.Linear default (uniform +/- 1/sqrt(fan_in)).
    Weights are stored as (in_features, out_features) = transpose of PyTorch layout."""
    dims = [(n_obs, hidden), (hidden, hidden), (hidden, hidden), (hidden, n_actions)]
    params = {}
    for i, (fan_in, fan_out) in enumerate(dims, start=1):
        key, kw, kb = jax.random.split(key, 3)
        bound = 1.0 / (fan_in ** 0.5)
        params[f"w{i}"] = jax.random.uniform(
            kw, (fan_in, fan_out), jnp.float32, minval=-bound, maxval=bound)
        params[f"b{i}"] = jax.random.uniform(
            kb, (1, fan_out), jnp.float32, minval=-bound, maxval=bound)
    return params


def reference_forward(x, params, compute_dtype=jnp.bfloat16):
    """Plain-JAX reference using the same bf16-weight / f32-accumulate discipline."""
    h = x.astype(compute_dtype)
    for i in (1, 2, 3):
        w = params[f"w{i}"].astype(compute_dtype)
        h = jnp.dot(h, w, preferred_element_type=jnp.float32) + params[f"b{i}"]
        h = jnp.maximum(h, 0.0).astype(compute_dtype)
    w4 = params["w4"].astype(compute_dtype)
    return jnp.dot(h, w4, preferred_element_type=jnp.float32) + params["b4"]


if __name__ == "__main__":
    B, N_OBS, N_ACTIONS = 2, 32, 16

    key = jax.random.PRNGKey(0)
    key, kx = jax.random.split(key)
    x = jax.random.normal(kx, (B, N_OBS), dtype=jnp.float32)
    params = init_params(key, N_OBS, N_ACTIONS)

    out = play_network_forward(x, params)
    out = jax.block_until_ready(out)

    ref = reference_forward(x, params)
    assert out.shape == (B, N_ACTIONS)
    # bf16 weights/activations with f32 accumulation: allow a small tolerance for
    # accumulation-order / bf16-rounding differences between MXU and XLA paths.
    assert jnp.allclose(out, ref, atol=2e-3, rtol=2e-3), "mismatch vs reference"

    print("KERNEL_OK")
</pallas_src>

<mosaic_0001>
module attributes {stable_mosaic.version = 11 : i64} {
  func.func @play_network_kernel(%arg0: i32, %arg1: memref<16x32xbf16, #tpu.memory_space<vmem>>, %arg2: memref<32x128xbf16, #tpu.memory_space<vmem>>, %arg3: memref<3x128x128xbf16, #tpu.memory_space<vmem>>, %arg4: memref<4x128xf32, #tpu.memory_space<vmem>>, %arg5: memref<16x128xf32, #tpu.memory_space<vmem>>) attributes {dimension_semantics = [#tpu.dimension_semantics<parallel>], iteration_bounds = array<i64: 1>, scalar_prefetch = 0 : i64, scratch_operands = 0 : i64, tpu.core_type = #tpu.core_type<tc>, window_params = [{transform_indices = @transform_0, window_bounds = array<i64: 16, 32>}, {pipeline_mode = #tpu.pipeline_mode<synchronous>, transform_indices = @transform_1, window_bounds = array<i64: 32, 128>}, {pipeline_mode = #tpu.pipeline_mode<synchronous>, transform_indices = @transform_2, window_bounds = array<i64: 3, 128, 128>}, {pipeline_mode = #tpu.pipeline_mode<synchronous>, transform_indices = @transform_3, window_bounds = array<i64: 4, 128>}, {transform_indices = @transform_4, window_bounds = array<i64: 16, 128>}]} {
    %c0 = arith.constant 0 : index
    %c0_0 = arith.constant 0 : index
    %0 = vector.load %arg1[%c0, %c0_0] : memref<16x32xbf16, #tpu.memory_space<vmem>>, vector<16x32xbf16>
    %c0_1 = arith.constant 0 : index
    %c0_2 = arith.constant 0 : index
    %1 = vector.load %arg2[%c0_1, %c0_2] : memref<32x128xbf16, #tpu.memory_space<vmem>>, vector<32x128xbf16>
    %cst = arith.constant dense<0.000000e+00> : vector<16x128xf32>
    %2 = tpu.matmul %0, %1, %cst {dimension_numbers = #tpu.dot_dimension_numbers<[1], [0], [0], [1], [0, 0, 1, 1], [], []>} : vector<16x32xbf16>, vector<32x128xbf16>, vector<16x128xf32> -> vector<16x128xf32>
    %c0_3 = arith.constant 0 : index
    %c0_4 = arith.constant 0 : index
    %3 = vector.load %arg4[%c0_3, %c0_4] : memref<4x128xf32, #tpu.memory_space<vmem>>, vector<1x128xf32>
    %4 = vector.broadcast %3 : vector<1x128xf32> to vector<16x128xf32>
    %5 = arith.addf %2, %4 : vector<16x128xf32>
    %cst_5 = arith.constant 0.000000e+00 : f32
    %6 = vector.broadcast %cst_5 : f32 to vector<16x128xf32>
    %7 = arith.maximumf %5, %6 : vector<16x128xf32>
    %8 = arith.truncf %7 : vector<16x128xf32> to vector<16x128xbf16>
    %c0_6 = arith.constant 0 : index
    %c0_7 = arith.constant 0 : index
    %c0_8 = arith.constant 0 : index
    %9 = vector.load %arg3[%c0_6, %c0_7, %c0_8] : memref<3x128x128xbf16, #tpu.memory_space<vmem>>, vector<1x128x128xbf16>
    %10 = vector.shape_cast %9 : vector<1x128x128xbf16> to vector<128x128xbf16>
    %cst_9 = arith.constant dense<0.000000e+00> : vector<16x128xf32>
    %11 = tpu.matmul %8, %10, %cst_9 {dimension_numbers = #tpu.dot_dimension_numbers<[1], [0], [0], [1], [0, 0, 1, 1], [], []>} : vector<16x128xbf16>, vector<128x128xbf16>, vector<16x128xf32> -> vector<16x128xf32>
    %c1 = arith.constant 1 : index
    %c0_10 = arith.constant 0 : index
    %12 = vector.load %arg4[%c1, %c0_10] : memref<4x128xf32, #tpu.memory_space<vmem>>, vector<1x128xf32>
    %13 = vector.broadcast %12 : vector<1x128xf32> to vector<16x128xf32>
    %14 = arith.addf %11, %13 : vector<16x128xf32>
    %cst_11 = arith.constant 0.000000e+00 : f32
    %15 = vector.broadcast %cst_11 : f32 to vector<16x128xf32>
    %16 = arith.maximumf %14, %15 : vector<16x128xf32>
    %17 = arith.truncf %16 : vector<16x128xf32> to vector<16x128xbf16>
    %c1_12 = arith.constant 1 : index
    %c0_13 = arith.constant 0 : index
    %c0_14 = arith.constant 0 : index
    %18 = vector.load %arg3[%c1_12, %c0_13, %c0_14] : memref<3x128x128xbf16, #tpu.memory_space<vmem>>, vector<1x128x128xbf16>
    %19 = vector.shape_cast %18 : vector<1x128x128xbf16> to vector<128x128xbf16>
    %cst_15 = arith.constant dense<0.000000e+00> : vector<16x128xf32>
    %20 = tpu.matmul %17, %19, %cst_15 {dimension_numbers = #tpu.dot_dimension_numbers<[1], [0], [0], [1], [0, 0, 1, 1], [], []>} : vector<16x128xbf16>, vector<128x128xbf16>, vector<16x128xf32> -> vector<16x128xf32>
    %c2 = arith.constant 2 : index
    %c0_16 = arith.constant 0 : index
    %21 = vector.load %arg4[%c2, %c0_16] : memref<4x128xf32, #tpu.memory_space<vmem>>, vector<1x128xf32>
    %22 = vector.broadcast %21 : vector<1x128xf32> to vector<16x128xf32>
    %23 = arith.addf %20, %22 : vector<16x128xf32>
    %cst_17 = arith.constant 0.000000e+00 : f32
    %24 = vector.broadcast %cst_17 : f32 to vector<16x128xf32>
    %25 = arith.maximumf %23, %24 : vector<16x128xf32>
    %26 = arith.truncf %25 : vector<16x128xf32> to vector<16x128xbf16>
    %c2_18 = arith.constant 2 : index
    %c0_19 = arith.constant 0 : index
    %c0_20 = arith.constant 0 : index
    %27 = vector.load %arg3[%c2_18, %c0_19, %c0_20] : memref<3x128x128xbf16, #tpu.memory_space<vmem>>, vector<1x128x128xbf16>
    %28 = vector.shape_cast %27 : vector<1x128x128xbf16> to vector<128x128xbf16>
    %cst_21 = arith.constant dense<0.000000e+00> : vector<16x128xf32>
    %29 = tpu.matmul %26, %28, %cst_21 {dimension_numbers = #tpu.dot_dimension_numbers<[1], [0], [0], [1], [0, 0, 1, 1], [], []>} : vector<16x128xbf16>, vector<128x128xbf16>, vector<16x128xf32> -> vector<16x128xf32>
    %c3 = arith.constant 3 : index
    %c0_22 = arith.constant 0 : index
    %30 = vector.load %arg4[%c3, %c0_22] : memref<4x128xf32, #tpu.memory_space<vmem>>, vector<1x128xf32>
    %31 = vector.broadcast %30 : vector<1x128xf32> to vector<16x128xf32>
    %32 = arith.addf %29, %31 : vector<16x128xf32>
    %c0_23 = arith.constant 0 : index
    %c0_24 = arith.constant 0 : index
    %33 = vector.load %arg5[%c0_23, %c0_24] : memref<16x128xf32, #tpu.memory_space<vmem>>, vector<16x128xf32>
    tpu.vector_store %arg5[%c0_23, %c0_24], %32 {strides = array<i32>} : memref<16x128xf32, #tpu.memory_space<vmem>>, vector<16x128xf32>,
    return
  }
  func.func @transform_0(%arg0: i32) -> (i32, i32) {
    %c0_i32 = arith.constant 0 : i32
    %c0_i32_0 = arith.constant 0 : i32
    return %arg0, %c0_i32 : i32, i32
  }
  func.func @transform_1(%arg0: i32) -> (i32, i32) {
    %c0_i32 = arith.constant 0 : i32
    %c0_i32_0 = arith.constant 0 : i32
    %c0_i32_1 = arith.constant 0 : i32
    return %c0_i32, %c0_i32_0 : i32, i32
  }
  func.func @transform_2(%arg0: i32) -> (i32, i32, i32) {
    %c0_i32 = arith.constant 0 : i32
    %c0_i32_0 = arith.constant 0 : i32
    %c0_i32_1 = arith.constant 0 : i32
    %c0_i32_2 = arith.constant 0 : i32
    return %c0_i32, %c0_i32_0, %c0_i32_1 : i32, i32, i32
  }
  func.func @transform_3(%arg0: i32) -> (i32, i32) {
    %c0_i32 = arith.constant 0 : i32
    %c0_i32_0 = arith.constant 0 : i32
    %c0_i32_1 = arith.constant 0 : i32
    return %c0_i32, %c0_i32_0 : i32, i32
  }
  func.func @transform_4(%arg0: i32) -> (i32, i32) {
    %c0_i32 = arith.constant 0 : i32
    %c0_i32_0 = arith.constant 0 : i32
    return %arg0, %c0_i32 : i32, i32
  }
}

</mosaic_0001>

<llo_original>
// kernel: tpu_custom_call.1
$region0: #{tpu_custom_call.1}
  #allocation0 [shape = 'u32[]', space=smem, size = 0x4, offset = 0x4, fixed_abs, tag = 'smem constant byte address 0x4 - core index']
  #allocation1 [shape = 'u32[72,128]{1,0:T(1,128)}', space=vmem, size = 0x9000, scoped, tag = 'internal scratch']
  %s0 = inlined_call_operand.hbm [shape: bf16[16,32], index: 0, kind: input, shape index: {}]
  %s1 = inlined_call_operand.hbm [shape: bf16[32,128], index: 1, kind: input, shape index: {}]
  %s2 = inlined_call_operand.hbm [shape: bf16[3,128,128], index: 2, kind: input, shape index: {}]
  %s3 = inlined_call_operand.hbm [shape: f32[4,128], index: 3, kind: input, shape index: {}]
  %s4 = inlined_call_operand.hbm [shape: f32[16,128], index: 4, kind: output, shape index: {}]
  %s5 = sld [smem:[#allocation0]]
  $region42: #{tpu_custom_call.1} parent=0
    _
  %s7 = ssub.s32 1, %s5
  %s8 = scalar_select 0, %s7, %s5
  $region1: #{tpu_custom_call.1} parent=0
    #allocation2 [shape = 'u8[4096]{0}', space=vmem, size = 0x1000, scoped, tag = 'input window, operand 0, single buffered']
    #allocation3 [shape = 's32[1]{0}', space=sflag, size = 0x4, scoped, tag = 'scoped memory for tpu_custom_call.1']
    #allocation4 [shape = 's32[1]{0}', space=sflag, size = 0x4, scoped, tag = 'scoped memory for tpu_custom_call.1']
    #allocation5 [shape = 'u8[8192]{0}', space=vmem, size = 0x2000, scoped, tag = 'input window, operand 1, single buffered']
    #allocation6 [shape = 's32[1]{0}', space=sflag, size = 0x4, scoped, tag = 'scoped memory for tpu_custom_call.1']
    #allocation7 [shape = 'u8[98304]{0}', space=vmem, size = 0x18000, scoped, tag = 'input window, operand 2, single buffered']
    #allocation8 [shape = 'u8[2048]{0}', space=vmem, size = 0x800, scoped, tag = 'input window, operand 3, single buffered']
    #allocation9 [shape = 's32[1]{0}', space=sflag, size = 0x4, scoped, tag = 'scoped memory for tpu_custom_call.1']
    #allocation10 [shape = 'u8[8192]{0}', space=vmem, size = 0x2000, scoped, tag = 'output window, operand 0, single buffered']
    %9 = vsyncpa [#allocation3], 0
    %10 = vsyncpa [#allocation6], 0
    %11 = vsyncpa [#allocation9], 0
    %12 = vsyncpa [#allocation4], 0
    // Predicated region
    $region2: #{tpu_custom_call.1} parent=1 // pred_check
      _
    $region3: #{tpu_custom_call.1} parent=1 // pred_check_branch
      %14 = sbr.rel (0) target = $region5
    $region4: #{tpu_custom_call.1} parent=1 // pred_region
      %16 = vsyncadd [#allocation3], 0
      %s17 = sshll.u32 %s0, 4
      %s18 = int_to_ptr.hbm [resolvable:$true] %s17
      %s19 = sshll.u32 [#allocation2], 4
      %s20 = int_to_ptr.vmem [resolvable:$true] %s19
      %25 = dma.hbm_to_vmem [thread:$0]  %s18, 128, %s20, [#allocation3], 64, 64, 4
    $region5: #{tpu_custom_call.1} parent=1 // pred_fallthru
      _
    // Predicated region
    $region6: #{tpu_custom_call.1} parent=1 // pred_check
      _
    $region7: #{tpu_custom_call.1} parent=1 // pred_check_branch
      %27 = sbr.rel (0) target = $region9
    $region8: #{tpu_custom_call.1} parent=1 // pred_region
      %29 = vsyncadd [#allocation6], 0
      %s30 = sshll.u32 %s1, 4
      %s31 = int_to_ptr.hbm [resolvable:$true] %s30
      %s32 = sshll.u32 [#allocation5], 4
      %s33 = int_to_ptr.vmem [resolvable:$true] %s32
      %38 = dma.hbm_to_vmem [thread:$0]  %s31, 256, %s33, [#allocation6], 64, 64, 4
    $region9: #{tpu_custom_call.1} parent=1 // pred_fallthru
      _
    // Predicated region
    $region10: #{tpu_custom_call.1} parent=1 // pred_check
      _
    $region11: #{tpu_custom_call.1} parent=1 // pred_check_branch
      %40 = sbr.rel (0) target = $region13
    $region12: #{tpu_custom_call.1} parent=1 // pred_region
      %42 = vsyncadd [#allocation6], 0
      %s43 = sshll.u32 %s2, 4
      %s44 = int_to_ptr.hbm [resolvable:$true] %s43
      %s45 = sshll.u32 [#allocation7], 4
      %s46 = int_to_ptr.vmem [resolvable:$true] %s45
      %51 = dma.hbm_to_vmem [thread:$0]  %s44, 3072, %s46, [#allocation6], 64, 64, 4
    $region13: #{tpu_custom_call.1} parent=1 // pred_fallthru
      _
    // Predicated region
    $region14: #{tpu_custom_call.1} parent=1 // pred_check
      _
    $region15: #{tpu_custom_call.1} parent=1 // pred_check_branch
      %53 = sbr.rel (0) target = $region17
    $region16: #{tpu_custom_call.1} parent=1 // pred_region
      %55 = vsyncadd [#allocation9], 0
      %s57 = sshll.u32 %s3, 4
      %s58 = int_to_ptr.hbm [resolvable:$true] %s57
      %s59 = sshll.u32 [#allocation8], 4
      %s60 = int_to_ptr.vmem [resolvable:$true] %s59
      %62 = dma.hbm_to_vmem [thread:$0]  %s58, 64, %s60, [#allocation9]
    $region17: #{tpu_custom_call.1} parent=1 // pred_fallthru
      _
    // Predicated region
    $region18: #{tpu_custom_call.1} parent=1 // pred_check
      _
    $region19: #{tpu_custom_call.1} parent=1 // pred_check_branch
      %64 = sbr.rel (0) target = $region21
    $region20: #{tpu_custom_call.1} parent=1 // pred_region
      %66 = dma.done [#allocation3], 128
    $region21: #{tpu_custom_call.1} parent=1 // pred_fallthru
      _
    // Predicated region
    $region22: #{tpu_custom_call.1} parent=1 // pred_check
      _
    $region23: #{tpu_custom_call.1} parent=1 // pred_check_branch
      %68 = sbr.rel (0) target = $region25
    $region24: #{tpu_custom_call.1} parent=1 // pred_region
      %70 = dma.done [#allocation6], 256
    $region25: #{tpu_custom_call.1} parent=1 // pred_fallthru
      _
    // Predicated region
    $region26: #{tpu_custom_call.1} parent=1 // pred_check
      _
    $region27: #{tpu_custom_call.1} parent=1 // pred_check_branch
      %72 = sbr.rel (0) target = $region29
    $region28: #{tpu_custom_call.1} parent=1 // pred_region
      %74 = dma.done [#allocation6], 3072
    $region29: #{tpu_custom_call.1} parent=1 // pred_fallthru
      _
    // Predicated region
    $region30: #{tpu_custom_call.1} parent=1 // pred_check
      _
    $region31: #{tpu_custom_call.1} parent=1 // pred_check_branch
      %76 = sbr.rel (0) target = $region33
    $region32: #{tpu_custom_call.1} parent=1 // pred_region
      %78 = dma.done [#allocation9], 64
    $region33: #{tpu_custom_call.1} parent=1 // pred_fallthru
      _
    %v80 = vld [vmem:[#allocation2] sm:$0xf]
    %v81 = vld [vmem:[#allocation2 + $0x4] sm:$0xf]
    %v82 = vld [vmem:[#allocation5] sm:$0xf]
    %v83 = vld [vmem:[#allocation5 + $0x4] sm:$0xf]
    %v84 = vld [vmem:[#allocation5 + $0x8] sm:$0xf]
    %v85 = vld [vmem:[#allocation5 + $0xc] sm:$0xf]
    %v86 = vld [vmem:[#allocation8] sm:$0x1]
    %v87 = vperm.slane %v86, 0
    %v90 = vunpack.c.l.b16 %v80
    %v91 = vunpack.c.l.b16 %v81
    %v92 = vpack.c.b16 %v91, %v90
    %v97 = vunpack.c.l.b16 %v82
    %v98 = vunpack.c.l.b16 %v83
    %v99 = vunpack.c.l.b16 %v84
    %v100 = vunpack.c.l.b16 %v85
    %v101 = vpack.c.b16 %v98, %v97
    %v102 = vpack.c.b16 %v100, %v99
    %vm105 = vcmask 261120
    %v107 = vsel %vm105, %v92, 0
    %109 = vmatpush.bf16.msra.mxu0 0
    %110 = vmatpush.bf16.msra.mxu0 0
    %111 = vmatpush.bf16.msra.mxu0 0
    %112 = vmatpush.bf16.msra.mxu0 0
    %113 = vmatpush.bf16.msra.mxu0 0
    %114 = vmatpush.bf16.msra.mxu0 0
    %115 = vmatpush.bf16.msra.mxu0 %v102
    %116 = vmatpush.bf16.msra.mxu0 %v101
    %117 = vmatmul.bf16.gmra.mxu0 %v107
    %v118 = vpop.f32.mrf.mxu0
    %v119 = vadd.f32 %v87, %v118
    %v120 = vpop.f32.mrf.mxu0
    %v121 = vadd.f32 %v87, %v120
    %122 = vdwg.mxu0
    %v123 = vmax.f32 %v119, 0.0
    %v124 = vmax.f32 %v121, 0.0
    %v125 = vpack.c.bf16 %v124, %v123
    %v126 = vld [vmem:[#allocation7] sm:$0xf]
    %v127 = vld [vmem:[#allocation7 + $0x4] sm:$0xf]
    %v128 = vld [vmem:[#allocation7 + $0x8] sm:$0xf]
    %v129 = vld [vmem:[#allocation7 + $0xc] sm:$0xf]
    %v130 = vld [vmem:[#allocation7 + $0x10] sm:$0xf]
    %v131 = vld [vmem:[#allocation7 + $0x14] sm:$0xf]
    %v132 = vld [vmem:[#allocation7 + $0x18] sm:$0xf]
    %v133 = vld [vmem:[#allocation7 + $0x1c] sm:$0xf]
    %v134 = vld [vmem:[#allocation7 + $0x20] sm:$0xf]
    %v135 = vld [vmem:[#allocation7 + $0x24] sm:$0xf]
    %v136 = vld [vmem:[#allocation7 + $0x28] sm:$0xf]
    %v137 = vld [vmem:[#allocation7 + $0x2c] sm:$0xf]
    %v138 = vld [vmem:[#allocation7 + $0x30] sm:$0xf]
    %v139 = vld [vmem:[#allocation7 + $0x34] sm:$0xf]
    %v140 = vld [vmem:[#allocation7 + $0x38] sm:$0xf]
    %v141 = vld [vmem:[#allocation7 + $0x3c] sm:$0xf]
    %v142 = vld [vmem:[#allocation8 + $0x1] sm:$0x1]
    %v143 = vperm.slane %v142, 0
    %v160 = vunpack.c.l.b16 %v126
    %v161 = vunpack.c.l.b16 %v127
    %v162 = vunpack.c.l.b16 %v128
    %v163 = vunpack.c.l.b16 %v129
    %v164 = vunpack.c.l.b16 %v130
    %v165 = vunpack.c.l.b16 %v131
    %v166 = vunpack.c.l.b16 %v132
    %v167 = vunpack.c.l.b16 %v133
    %v168 = vunpack.c.l.b16 %v134
    %v169 = vunpack.c.l.b16 %v135
    %v170 = vunpack.c.l.b16 %v136
    %v171 = vunpack.c.l.b16 %v137
    %v172 = vunpack.c.l.b16 %v138
    %v173 = vunpack.c.l.b16 %v139
    %v174 = vunpack.c.l.b16 %v140
    %v175 = vunpack.c.l.b16 %v141
    %v176 = vpack.c.b16 %v161, %v160
    %v177 = vpack.c.b16 %v163, %v162
    %v178 = vpack.c.b16 %v165, %v164
    %v179 = vpack.c.b16 %v167, %v166
    %v180 = vpack.c.b16 %v169, %v168
    %v181 = vpack.c.b16 %v171, %v170
    %v182 = vpack.c.b16 %v173, %v172
    %v183 = vpack.c.b16 %v175, %v174
    %192 = vmatpush.bf16.msra.mxu0 %v183
    %193 = vmatpush.bf16.msra.mxu0 %v182
    %194 = vmatpush.bf16.msra.mxu0 %v181
    %195 = vmatpush.bf16.msra.mxu0 %v180
    %196 = vmatpush.bf16.msra.mxu0 %v179
    %197 = vmatpush.bf16.msra.mxu0 %v178
    %198 = vmatpush.bf16.msra.mxu0 %v177
    %199 = vmatpush.bf16.msra.mxu0 %v176
    %200 = vmatmul.bf16.gmra.mxu0 %v125
    %v201 = vpop.f32.mrf.mxu0
    %v202 = vadd.f32 %v143, %v201
    %v203 = vpop.f32.mrf.mxu0
    %v204 = vadd.f32 %v143, %v203
    %205 = vdwg.mxu0
    %v206 = vmax.f32 %v202, 0.0
    %v207 = vmax.f32 %v204, 0.0
    %v208 = vpack.c.bf16 %v207, %v206
    %s209 = scalar_lea.vmem [#allocation7], 64
    %v210 = vld [vmem:[%s209] sm:$0xf]
    %v211 = vld [vmem:[%s209 + $0x4] sm:$0xf]
    %v212 = vld [vmem:[%s209 + $0x8] sm:$0xf]
    %v213 = vld [vmem:[%s209 + $0xc] sm:$0xf]
    %v214 = vld [vmem:[%s209 + $0x10] sm:$0xf]
    %v215 = vld [vmem:[%s209 + $0x14] sm:$0xf]
    %v216 = vld [vmem:[%s209 + $0x18] sm:$0xf]
    %v217 = vld [vmem:[%s209 + $0x1c] sm:$0xf]
    %v218 = vld [vmem:[%s209 + $0x20] sm:$0xf]
    %v219 = vld [vmem:[%s209 + $0x24] sm:$0xf]
    %v220 = vld [vmem:[%s209 + $0x28] sm:$0xf]
    %v221 = vld [vmem:[%s209 + $0x2c] sm:$0xf]
    %v222 = vld [vmem:[%s209 + $0x30] sm:$0xf]
    %v223 = vld [vmem:[%s209 + $0x34] sm:$0xf]
    %v224 = vld [vmem:[%s209 + $0x38] sm:$0xf]
    %v225 = vld [vmem:[%s209 + $0x3c] sm:$0xf]
    %v226 = vld [vmem:[#allocation8 + $0x2] sm:$0x1]
    %v227 = vperm.slane %v226, 0
    %v244 = vunpack.c.l.b16 %v210
    %v245 = vunpack.c.l.b16 %v211
    %v246 = vunpack.c.l.b16 %v212
    %v247 = vunpack.c.l.b16 %v213
    %v248 = vunpack.c.l.b16 %v214
    %v249 = vunpack.c.l.b16 %v215
    %v250 = vunpack.c.l.b16 %v216
    %v251 = vunpack.c.l.b16 %v217
    %v252 = vunpack.c.l.b16 %v218
    %v253 = vunpack.c.l.b16 %v219
    %v254 = vunpack.c.l.b16 %v220
    %v255 = vunpack.c.l.b16 %v221
    %v256 = vunpack.c.l.b16 %v222
    %v257 = vunpack.c.l.b16 %v223
    %v258 = vunpack.c.l.b16 %v224
    %v259 = vunpack.c.l.b16 %v225
    %v260 = vpack.c.b16 %v245, %v244
    %v261 = vpack.c.b16 %v247, %v246
    %v262 = vpack.c.b16 %v249, %v248
    %v263 = vpack.c.b16 %v251, %v250
    %v264 = vpack.c.b16 %v253, %v252
    %v265 = vpack.c.b16 %v255, %v254
    %v266 = vpack.c.b16 %v257, %v256
    %v267 = vpack.c.b16 %v259, %v258
    %276 = vmatpush.bf16.msra.mxu0 %v267
    %277 = vmatpush.bf16.msra.mxu0 %v266
    %278 = vmatpush.bf16.msra.mxu0 %v265
    %279 = vmatpush.bf16.msra.mxu0 %v264
    %280 = vmatpush.bf16.msra.mxu0 %v263
    %281 = vmatpush.bf16.msra.mxu0 %v262
    %282 = vmatpush.bf16.msra.mxu0 %v261
    %283 = vmatpush.bf16.msra.mxu0 %v260
    %284 = vmatmul.bf16.gmra.mxu0 %v208
    %v285 = vpop.f32.mrf.mxu0
    %v286 = vadd.f32 %v227, %v285
    %v287 = vpop.f32.mrf.mxu0
    %v288 = vadd.f32 %v227, %v287
    %289 = vdwg.mxu0
    %v290 = vmax.f32 %v286, 0.0
    %v291 = vmax.f32 %v288, 0.0
    %v292 = vpack.c.bf16 %v291, %v290
    %s293 = scalar_lea.vmem [#allocation7], 128
    %v294 = vld [vmem:[%s293] sm:$0xf]
    %v295 = vld [vmem:[%s293 + $0x4] sm:$0xf]
    %v296 = vld [vmem:[%s293 + $0x8] sm:$0xf]
    %v297 = vld [vmem:[%s293 + $0xc] sm:$0xf]
    %v298 = vld [vmem:[%s293 + $0x10] sm:$0xf]
    %v299 = vld [vmem:[%s293 + $0x14] sm:$0xf]
    %v300 = vld [vmem:[%s293 + $0x18] sm:$0xf]
    %v301 = vld [vmem:[%s293 + $0x1c] sm:$0xf]
    %v302 = vld [vmem:[%s293 + $0x20] sm:$0xf]
    %v303 = vld [vmem:[%s293 + $0x24] sm:$0xf]
    %v304 = vld [vmem:[%s293 + $0x28] sm:$0xf]
    %v305 = vld [vmem:[%s293 + $0x2c] sm:$0xf]
    %v306 = vld [vmem:[%s293 + $0x30] sm:$0xf]
    %v307 = vld [vmem:[%s293 + $0x34] sm:$0xf]
    %v308 = vld [vmem:[%s293 + $0x38] sm:$0xf]
    %v309 = vld [vmem:[%s293 + $0x3c] sm:$0xf]
    %v310 = vld [vmem:[#allocation8 + $0x3] sm:$0x1]
    %v311 = vperm.slane %v310, 0
    %v328 = vunpack.c.l.b16 %v294
    %v329 = vunpack.c.l.b16 %v295
    %v330 = vunpack.c.l.b16 %v296
    %v331 = vunpack.c.l.b16 %v297
    %v332 = vunpack.c.l.b16 %v298
    %v333 = vunpack.c.l.b16 %v299
    %v334 = vunpack.c.l.b16 %v300
    %v335 = vunpack.c.l.b16 %v301
    %v336 = vunpack.c.l.b16 %v302
    %v337 = vunpack.c.l.b16 %v303
    %v338 = vunpack.c.l.b16 %v304
    %v339 = vunpack.c.l.b16 %v305
    %v340 = vunpack.c.l.b16 %v306
    %v341 = vunpack.c.l.b16 %v307
    %v342 = vunpack.c.l.b16 %v308
    %v343 = vunpack.c.l.b16 %v309
    %v344 = vpack.c.b16 %v329, %v328
    %v345 = vpack.c.b16 %v331, %v330
    %v346 = vpack.c.b16 %v333, %v332
    %v347 = vpack.c.b16 %v335, %v334
    %v348 = vpack.c.b16 %v337, %v336
    %v349 = vpack.c.b16 %v339, %v338
    %v350 = vpack.c.b16 %v341, %v340
    %v351 = vpack.c.b16 %v343, %v342
    %360 = vmatpush.bf16.msra.mxu0 %v351
    %361 = vmatpush.bf16.msra.mxu0 %v350
    %362 = vmatpush.bf16.msra.mxu0 %v349
    %363 = vmatpush.bf16.msra.mxu0 %v348
    %364 = vmatpush.bf16.msra.mxu0 %v347
    %365 = vmatpush.bf16.msra.mxu0 %v346
    %366 = vmatpush.bf16.msra.mxu0 %v345
    %367 = vmatpush.bf16.msra.mxu0 %v344
    %368 = vmatmul.bf16.gmra.mxu0 %v292
    %v369 = vpop.f32.mrf.mxu0
    %v370 = vadd.f32 %v311, %v369
    %v371 = vpop.f32.mrf.mxu0
    %v372 = vadd.f32 %v311, %v371
    %373 = vdwg.mxu0
    %374 = vst [vmem:[#allocation10] sm:$0xff] %v370
    %375 = vst [vmem:[#allocation10 + $0x8] sm:$0xff] %v372
    // Predicated region
    $region34: #{tpu_custom_call.1} parent=1 // pred_check
      _
    $region35: #{tpu_custom_call.1} parent=1 // pred_check_branch
      %377 = sbr.rel (0) target = $region37
    $region36: #{tpu_custom_call.1} parent=1 // pred_region
      %379 = vsyncadd [#allocation4], 0
      %s380 = sshll.u32 [#allocation10], 4
      %s381 = int_to_ptr.vmem [resolvable:$true] %s380
      %s382 = sshll.u32 %s4, 4
      %s383 = int_to_ptr.hbm [resolvable:$true] %s382
      %388 = dma.vmem_to_hbm [thread:$0]  %s381, 256, %s383, [#allocation4], 128, 128, 8
    $region37: #{tpu_custom_call.1} parent=1 // pred_fallthru
      _
    // Predicated region
    $region38: #{tpu_custom_call.1} parent=1 // pred_check
      _
    $region39: #{tpu_custom_call.1} parent=1 // pred_check_branch
      %390 = sbr.rel (0) target = $region41
    $region40: #{tpu_custom_call.1} parent=1 // pred_region
      %392 = dma.done [#allocation4], 256
    $region41: #{tpu_custom_call.1} parent=1 // pred_fallthru
      _
    %393 = vsyncpa [#allocation3], 1
    %394 = vsyncpa [#allocation6], 1
    %395 = vsyncpa [#allocation9], 1
    %396 = vsyncpa [#allocation4], 1

</llo_original>
